<compile_context>
chip_gen: v6e
topology: v6e:2x2x1
jax: 0.10.0
libtpu: 0.0.40
codegen_flags: <defaults>
</compile_context>

<pallas_src>
import functools
import math

import jax
import jax.numpy as jnp
from jax import lax
from jax.experimental import pallas as pl
from jax.experimental.pallas import tpu as pltpu

_HALF_LOG_2PI = 0.5 * math.log(2.0 * math.pi)
_LOG_2 = math.log(2.0)


def _softplus(t):
    # numerically stable softplus usable inside the kernel
    return jnp.maximum(t, 0.0) + jnp.log1p(jnp.exp(-jnp.abs(t)))


def _actor_kernel(out_dim, sample_ref,
                  x_ref, w1_ref, b1_ref, w2_ref, b2_ref, w3t_ref, b3t_ref,
                  eps_t_ref, out_ref):
    cd = w1_ref.dtype
    # ---- MLP trunk: MXU matmuls with f32 accumulation. Weights/biases stay
    # VMEM-resident across batch tiles (constant index_map).  x is cast to the
    # compute dtype here (no wrapper-side convert op).
    # (first matmul contracts over K=inp only; <15% of FLOPs, left unpadded)
    x = x_ref[...].astype(cd)
    h = jnp.dot(x, w1_ref[...], preferred_element_type=jnp.float32) + b1_ref[...]
    h = jnp.maximum(h, 0.0)
    h = jnp.dot(h.astype(cd), w2_ref[...],
                preferred_element_type=jnp.float32) + b2_ref[...]
    h = jnp.maximum(h, 0.0)

    # ---- Fused head in TRANSPOSED orientation: head_T = w3^T @ h^T, shape
    # (2*out, tb) -> batch sits on the 128-lane axis, so the head math below is
    # lane-dense and the row split at `out_dim` is a free sublane-tile split.
    head_t = lax.dot_general(
        w3t_ref[...], h.astype(cd),
        dimension_numbers=(((1,), (1,)), ((), ())),
        preferred_element_type=jnp.float32) + b3t_ref[...]

    mean = head_t[:out_dim, :]                       # (out, tb)
    log_std = jnp.clip(head_t[out_dim:, :], -20.0, 2.0)

    # ---- Tanh-Gaussian head (f32 on VPU/EUP, dense vregs) ----
    s = sample_ref[0].astype(jnp.float32)            # float(sample), SMEM scalar
    eps = eps_t_ref[...]                             # (out, tb) standard normal
    std = jnp.exp(log_std) * s
    pre = mean + std * eps                           # rsample of the base Normal
    action = jnp.tanh(pre)

    # Normal log-pdf at `pre`: (pre - mean)/std == eps and log(std) == log_std
    # when sample=True (exact substitution; no divide, no extra log).  For
    # sample=False torch yields NaN (std=0); we keep this finite limit form.
    log_normal = -0.5 * eps * eps - log_std - _HALF_LOG_2PI
    # TanhTransform.log_abs_det_jacobian(x, y) = 2*(log 2 - x - softplus(-2x))
    ladj = 2.0 * (_LOG_2 - pre - _softplus(-2.0 * pre))
    lp = log_normal - ladj

    # direct sublane-aligned slice stores (no lane-axis concat), lane-dense in B
    out_ref[:out_dim, :] = action
    out_ref[out_dim:, :] = lp


def _num_tensorcores():
    """Best-effort TensorCore count of device 0 (2 on v7x / v4 / v5p megacore)."""
    try:
        dev = jax.devices()[0]
    except Exception:
        return 1
    n = getattr(dev, "num_cores", None)
    if isinstance(n, int) and n > 0:
        return n
    kind = str(getattr(dev, "device_kind", "")).lower()
    if ("lite" in kind) or ("v5e" in kind) or ("v6" in kind):
        return 1
    if ("v7" in kind) or ("v5p" in kind) or ("v4" in kind):
        return 2
    return 1


def _pick_block_b(B, block_b=None):
    """Batch tile: grid >= 2 on 2-TC chips (parallel axis shards across cores);
    one fat tile on single-TC chips (per-grid-step overhead dominates here)."""
    if block_b is not None:
        if block_b < B and B % block_b == 0 and block_b % 128 == 0:
            return block_b
        return B
    nc = _num_tensorcores()
    if nc >= 2:
        tb = B // nc
        if tb >= 128 and tb % 128 == 0 and B % tb == 0:
            return tb
    return B


def prepare_params(params, compute_dtype=jnp.bfloat16):
    """One-time packing (do this OUTSIDE the per-call path):
       * trunk weights cast to `compute_dtype` (bf16 default; f32 accumulation
         and f32 head math are preserved in-kernel),
       * fused head pre-transposed:  w3 (hid, 2*out) -> w3t (2*out, hid),
         b3 (1, 2*out) -> b3t (2*out, 1),
       * biases kept f32 (added after the f32-accumulated matmul)."""
    w1, b1, w2, b2, w3, b3 = params
    return (w1.astype(compute_dtype), b1.astype(jnp.float32),
            w2.astype(compute_dtype), b2.astype(jnp.float32),
            jnp.swapaxes(w3, 0, 1).astype(compute_dtype),
            b3.reshape(-1, 1).astype(jnp.float32))


def tanh_gaussian_actor(x, prepared, eps_t, sample=True, *, block_b=None):
    """x: [B, inp] f32.  prepared: output of prepare_params().
    eps_t: [out, B] standard-normal noise (batch-on-lanes layout).
    Returns (action [B, out], log_prob [B, out])."""
    w1, b1, w2, b2, w3t, b3t = prepared
    B, inp = x.shape
    hid = w1.shape[1]
    two_out = w3t.shape[0]
    out_dim = two_out // 2

    tb = _pick_block_b(B, block_b)
    grid = (B // tb,)

    sample_flag = jnp.array([1 if sample else 0], dtype=jnp.int32)

    resident = lambda shape: pl.BlockSpec(shape, lambda i, s: (0, 0))

    kernel = functools.partial(_actor_kernel, out_dim)

    # VMEM note: resident weights are ~hid*(inp+hid+2*out)*bytes (≈0.15 MiB bf16
    # at hid=256).  An f32-resident w2 crosses v7x's 32 MiB scoped default near
    # hid≈2.8k (64 MiB physical near hid≈4k) — keep bf16-resident weights or
    # tile the hid dimension before scaling that far.
    packed = pl.pallas_call(
        kernel,
        out_shape=jax.ShapeDtypeStruct((two_out, B), jnp.float32),
        grid_spec=pltpu.PrefetchScalarGridSpec(
            num_scalar_prefetch=1,
            grid=grid,
            in_specs=[
                pl.BlockSpec((tb, inp), lambda i, s: (i, 0)),      # x (batch-blocked)
                resident((inp, hid)),                              # w1
                resident((1, hid)),                                # b1
                resident((hid, hid)),                              # w2
                resident((1, hid)),                                # b2
                resident((two_out, hid)),                          # w3^T (fused head)
                resident((two_out, 1)),                            # b3^T
                pl.BlockSpec((out_dim, tb), lambda i, s: (0, i)),  # eps^T (batch on lanes)
            ],
            out_specs=pl.BlockSpec((two_out, tb), lambda i, s: (0, i)),
        ),
        compiler_params=pltpu.CompilerParams(
            dimension_semantics=("parallel",)),
    )(sample_flag, x, w1, b1, w2, b2, w3t, b3t, eps_t)

    return packed[:out_dim].T, packed[out_dim:].T


def init_params(key, inp_dim, out_dim, hid_dim=256):
    """PyTorch nn.Linear-style uniform(-1/sqrt(fan_in), 1/sqrt(fan_in)) init,
    returned as [in, out]-layout weights; final layer fused (2*out cols)."""
    ks = jax.random.split(key, 6)

    def linear(kw, kb, fan_in, fan_out):
        bound = 1.0 / math.sqrt(float(fan_in))
        w = jax.random.uniform(kw, (fan_in, fan_out), jnp.float32, -bound, bound)
        b = jax.random.uniform(kb, (1, fan_out), jnp.float32, -bound, bound)
        return w, b

    w1, b1 = linear(ks[0], ks[1], inp_dim, hid_dim)
    w2, b2 = linear(ks[2], ks[3], hid_dim, hid_dim)
    w3, b3 = linear(ks[4], ks[5], hid_dim, 2 * out_dim)  # cols = [mean | log_std]
    return (w1, b1, w2, b2, w3, b3)


# ---------------- pure-JAX references (same matmul precision recipe) ----------

def _trunk_ref(x, prepared):
    w1, b1, w2, b2, w3t, b3t = prepared
    cd, f32 = w1.dtype, jnp.float32
    h = jnp.maximum(jnp.dot(x.astype(cd), w1, preferred_element_type=f32) + b1, 0.0)
    h = jnp.maximum(jnp.dot(h.astype(cd), w2, preferred_element_type=f32) + b2, 0.0)
    head = (jnp.dot(h.astype(cd), jnp.swapaxes(w3t, 0, 1),
                    preferred_element_type=f32) + b3t.reshape(1, -1))
    out = head.shape[-1] // 2
    return head[:, :out], jnp.clip(head[:, out:], -20.0, 2.0)


def reference(x, prepared, eps_t, sample=True):
    """Torch-faithful TanhGaussian forward (sample=True for log_prob)."""
    mean, log_std = _trunk_ref(x, prepared)
    eps = eps_t.T
    std = jnp.exp(log_std) * float(sample)
    pre = mean + std * eps
    action = jnp.tanh(pre)
    log_normal = (-0.5 * ((pre - mean) / std) ** 2 - jnp.log(std)
                  - 0.5 * jnp.log(2.0 * jnp.pi))
    ladj = 2.0 * (jnp.log(2.0) - pre - jax.nn.softplus(-2.0 * pre))
    return action, log_normal - ladj


if __name__ == "__main__":
    B, INP, OUT, HID = 256, 32, 8, 256

    key = jax.random.PRNGKey(0)
    k_params, k_x, k_eps = jax.random.split(key, 3)

    raw = init_params(k_params, INP, OUT, HID)
    x = jax.random.normal(k_x, (B, INP), jnp.float32)
    eps_t = jax.random.normal(k_eps, (OUT, B), jnp.float32)   # batch-on-lanes noise

    # ---- f32 path: strict check against the torch-faithful reference ----
    p32 = prepare_params(raw, compute_dtype=jnp.float32)
    action, log_prob = tanh_gaussian_actor(x, p32, eps_t, sample=True)
    jax.block_until_ready((action, log_prob))
    ref_a, ref_lp = reference(x, p32, eps_t, sample=True)
    assert action.shape == (B, OUT) and log_prob.shape == (B, OUT)
    assert jnp.allclose(action, ref_a, atol=1e-4, rtol=1e-4)
    assert jnp.allclose(log_prob, ref_lp, atol=1e-3, rtol=1e-3)

    # ---- sample=False: runtime SMEM flag path; action == tanh(mean) ----
    a_det, lp_det = tanh_gaussian_actor(x, p32, eps_t, sample=False)
    mean_ref, _ = _trunk_ref(x, p32)
    assert jnp.allclose(a_det, jnp.tanh(mean_ref), atol=1e-4, rtol=1e-4)
    assert bool(jnp.all(jnp.isfinite(lp_det)))   # finite limit form (torch: NaN)

    # ---- bf16 trunk (default prepare_params dtype): action AND log_prob ----
    pbf = prepare_params(raw)                    # bf16 trunk, f32 head math
    a_bf, lp_bf = tanh_gaussian_actor(x, pbf, eps_t, sample=True)
    jax.block_until_ready((a_bf, lp_bf))
    ref_a_bf, ref_lp_bf = reference(x, pbf, eps_t, sample=True)  # same precision recipe
    assert jnp.allclose(a_bf, ref_a_bf, atol=2e-2, rtol=2e-2)
    assert jnp.allclose(lp_bf, ref_lp_bf, atol=5e-2, rtol=5e-2)
    # bf16-vs-f32 drift stays bounded (review correctness item)
    assert float(jnp.max(jnp.abs(a_bf - ref_a))) < 0.2
    assert float(jnp.max(jnp.abs(lp_bf - ref_lp))) < 1.0

    # ---- explicit 2-step grid (exercises the v7x-style parallel split) ----
    a2, lp2 = tanh_gaussian_actor(x, p32, eps_t, sample=True, block_b=128)
    jax.block_until_ready((a2, lp2))
    assert jnp.allclose(a2, ref_a, atol=1e-4, rtol=1e-4)
    assert jnp.allclose(lp2, ref_lp, atol=1e-3, rtol=1e-3)

    print("KERNEL_OK")
</pallas_src>

<mosaic_0001>
module attributes {stable_mosaic.version = 11 : i64} {
  func.func @_actor_kernel(%arg0: i32, %arg1: memref<1xi32, #tpu.memory_space<smem>>, %arg2: memref<256x32xf32, #tpu.memory_space<vmem>>, %arg3: memref<32x256xf32, #tpu.memory_space<vmem>>, %arg4: memref<1x256xf32, #tpu.memory_space<vmem>>, %arg5: memref<256x256xf32, #tpu.memory_space<vmem>>, %arg6: memref<1x256xf32, #tpu.memory_space<vmem>>, %arg7: memref<16x256xf32, #tpu.memory_space<vmem>>, %arg8: memref<16x1xf32, #tpu.memory_space<vmem>>, %arg9: memref<8x256xf32, #tpu.memory_space<vmem>>, %arg10: memref<16x256xf32, #tpu.memory_space<vmem>>) attributes {dimension_semantics = [#tpu.dimension_semantics<parallel>], iteration_bounds = array<i64: 1>, scalar_prefetch = 1 : i64, scratch_operands = 0 : i64, tpu.core_type = #tpu.core_type<tc>, window_params = [{transform_indices = @transform_0, window_bounds = array<i64: 256, 32>}, {pipeline_mode = #tpu.pipeline_mode<synchronous>, transform_indices = @transform_1, window_bounds = array<i64: 32, 256>}, {pipeline_mode = #tpu.pipeline_mode<synchronous>, transform_indices = @transform_2, window_bounds = array<i64: 1, 256>}, {pipeline_mode = #tpu.pipeline_mode<synchronous>, transform_indices = @transform_3, window_bounds = array<i64: 256, 256>}, {pipeline_mode = #tpu.pipeline_mode<synchronous>, transform_indices = @transform_4, window_bounds = array<i64: 1, 256>}, {pipeline_mode = #tpu.pipeline_mode<synchronous>, transform_indices = @transform_5, window_bounds = array<i64: 16, 256>}, {pipeline_mode = #tpu.pipeline_mode<synchronous>, transform_indices = @transform_6, window_bounds = array<i64: 16, 1>}, {transform_indices = @transform_7, window_bounds = array<i64: 8, 256>}, {transform_indices = @transform_8, window_bounds = array<i64: 16, 256>}]} {
    %c0 = arith.constant 0 : index
    %c0_0 = arith.constant 0 : index
    %0 = vector.load %arg2[%c0, %c0_0] : memref<256x32xf32, #tpu.memory_space<vmem>>, vector<256x32xf32>
    %c0_1 = arith.constant 0 : index
    %c0_2 = arith.constant 0 : index
    %1 = vector.load %arg3[%c0_1, %c0_2] : memref<32x256xf32, #tpu.memory_space<vmem>>, vector<32x256xf32>
    %cst = arith.constant dense<0.000000e+00> : vector<256x256xf32>
    %2 = tpu.matmul %0, %1, %cst {dimension_numbers = #tpu.dot_dimension_numbers<[1], [0], [0], [1], [0, 0, 1, 1], [], []>} : vector<256x32xf32>, vector<32x256xf32>, vector<256x256xf32> -> vector<256x256xf32>
    %c0_3 = arith.constant 0 : index
    %c0_4 = arith.constant 0 : index
    %3 = vector.load %arg4[%c0_3, %c0_4] : memref<1x256xf32, #tpu.memory_space<vmem>>, vector<1x256xf32>
    %4 = vector.broadcast %3 : vector<1x256xf32> to vector<256x256xf32>
    %5 = arith.addf %2, %4 : vector<256x256xf32>
    %cst_5 = arith.constant 0.000000e+00 : f32
    %6 = vector.broadcast %cst_5 : f32 to vector<256x256xf32>
    %7 = arith.maximumf %5, %6 : vector<256x256xf32>
    %c0_6 = arith.constant 0 : index
    %c0_7 = arith.constant 0 : index
    %8 = vector.load %arg5[%c0_6, %c0_7] : memref<256x256xf32, #tpu.memory_space<vmem>>, vector<256x256xf32>
    %cst_8 = arith.constant dense<0.000000e+00> : vector<256x256xf32>
    %9 = tpu.matmul %7, %8, %cst_8 {dimension_numbers = #tpu.dot_dimension_numbers<[1], [0], [0], [1], [0, 0, 1, 1], [], []>} : vector<256x256xf32>, vector<256x256xf32>, vector<256x256xf32> -> vector<256x256xf32>
    %c0_9 = arith.constant 0 : index
    %c0_10 = arith.constant 0 : index
    %10 = vector.load %arg6[%c0_9, %c0_10] : memref<1x256xf32, #tpu.memory_space<vmem>>, vector<1x256xf32>
    %11 = vector.broadcast %10 : vector<1x256xf32> to vector<256x256xf32>
    %12 = arith.addf %9, %11 : vector<256x256xf32>
    %cst_11 = arith.constant 0.000000e+00 : f32
    %13 = vector.broadcast %cst_11 : f32 to vector<256x256xf32>
    %14 = arith.maximumf %12, %13 : vector<256x256xf32>
    %c0_12 = arith.constant 0 : index
    %c0_13 = arith.constant 0 : index
    %15 = vector.load %arg7[%c0_12, %c0_13] : memref<16x256xf32, #tpu.memory_space<vmem>>, vector<16x256xf32>
    %cst_14 = arith.constant dense<0.000000e+00> : vector<16x256xf32>
    %16 = tpu.matmul %15, %14, %cst_14 {dimension_numbers = #tpu.dot_dimension_numbers<[1], [1], [0], [0], [0, 0, 1, 0], [], []>} : vector<16x256xf32>, vector<256x256xf32>, vector<16x256xf32> -> vector<16x256xf32>
    %c0_15 = arith.constant 0 : index
    %c0_16 = arith.constant 0 : index
    %17 = vector.load %arg8[%c0_15, %c0_16] : memref<16x1xf32, #tpu.memory_space<vmem>>, vector<16x1xf32>
    %18 = vector.broadcast %17 : vector<16x1xf32> to vector<16x256xf32>
    %19 = arith.addf %16, %18 : vector<16x256xf32>
    %20 = vector.extract_strided_slice %19 {offsets = [0, 0], sizes = [8, 256], strides = [1, 1]} : vector<16x256xf32> to vector<8x256xf32>
    %21 = vector.extract_strided_slice %19 {offsets = [8, 0], sizes = [8, 256], strides = [1, 1]} : vector<16x256xf32> to vector<8x256xf32>
    %cst_17 = arith.constant -2.000000e+01 : f32
    %cst_18 = arith.constant 2.000000e+00 : f32
    %22 = vector.broadcast %cst_17 : f32 to vector<8x256xf32>
    %23 = arith.maximumf %22, %21 : vector<8x256xf32>
    %24 = vector.broadcast %cst_18 : f32 to vector<8x256xf32>
    %25 = arith.minimumf %24, %23 : vector<8x256xf32>
    %c0_19 = arith.constant 0 : index
    %26 = memref.load %arg1[%c0_19] : memref<1xi32, #tpu.memory_space<smem>>
    %27 = arith.sitofp %26 : i32 to f32
    %c0_20 = arith.constant 0 : index
    %c0_21 = arith.constant 0 : index
    %28 = vector.load %arg9[%c0_20, %c0_21] : memref<8x256xf32, #tpu.memory_space<vmem>>, vector<8x256xf32>
    %29 = math.exp %25 : vector<8x256xf32>
    %30 = vector.broadcast %27 : f32 to vector<8x256xf32>
    %31 = arith.mulf %29, %30 : vector<8x256xf32>
    %32 = arith.mulf %31, %28 : vector<8x256xf32>
    %33 = arith.addf %20, %32 : vector<8x256xf32>
    %34 = math.tanh %33 : vector<8x256xf32>
    %cst_22 = arith.constant -5.000000e-01 : f32
    %35 = vector.broadcast %cst_22 : f32 to vector<8x256xf32>
    %36 = arith.mulf %35, %28 : vector<8x256xf32>
    %37 = arith.mulf %36, %28 : vector<8x256xf32>
    %38 = arith.subf %37, %25 : vector<8x256xf32>
    %cst_23 = arith.constant 0.918938517 : f32
    %39 = vector.broadcast %cst_23 : f32 to vector<8x256xf32>
    %40 = arith.subf %38, %39 : vector<8x256xf32>
    %cst_24 = arith.constant 0.693147182 : f32
    %41 = vector.broadcast %cst_24 : f32 to vector<8x256xf32>
    %42 = arith.subf %41, %33 : vector<8x256xf32>
    %cst_25 = arith.constant -2.000000e+00 : f32
    %43 = vector.broadcast %cst_25 : f32 to vector<8x256xf32>
    %44 = arith.mulf %43, %33 : vector<8x256xf32>
    %cst_26 = arith.constant 0.000000e+00 : f32
    %45 = vector.broadcast %cst_26 : f32 to vector<8x256xf32>
    %46 = arith.maximumf %44, %45 : vector<8x256xf32>
    %47 = math.absf %44 : vector<8x256xf32>
    %cst_27 = arith.constant 0.000000e+00 : f32
    %48 = vector.broadcast %cst_27 : f32 to vector<8x256xf32>
    %49 = arith.subf %48, %47 : vector<8x256xf32>
    %50 = math.exp %49 : vector<8x256xf32>
    %51 = math.log1p %50 : vector<8x256xf32>
    %52 = arith.addf %46, %51 : vector<8x256xf32>
    %53 = arith.subf %42, %52 : vector<8x256xf32>
    %cst_28 = arith.constant 2.000000e+00 : f32
    %54 = vector.broadcast %cst_28 : f32 to vector<8x256xf32>
    %55 = arith.mulf %54, %53 : vector<8x256xf32>
    %56 = arith.subf %40, %55 : vector<8x256xf32>
    %c0_29 = arith.constant 0 : index
    %c0_30 = arith.constant 0 : index
    %57 = vector.load %arg10[%c0_29, %c0_30] : memref<16x256xf32, #tpu.memory_space<vmem>>, vector<8x256xf32>
    tpu.vector_store %arg10[%c0_29, %c0_30], %34 {strides = array<i32>} : memref<16x256xf32, #tpu.memory_space<vmem>>, vector<8x256xf32>,
    %c8 = arith.constant 8 : index
    %c0_31 = arith.constant 0 : index
    %58 = vector.load %arg10[%c8, %c0_31] : memref<16x256xf32, #tpu.memory_space<vmem>>, vector<8x256xf32>
    tpu.vector_store %arg10[%c8, %c0_31], %56 {strides = array<i32>} : memref<16x256xf32, #tpu.memory_space<vmem>>, vector<8x256xf32>,
    return
  }
  func.func @transform_0(%arg0: i32, %arg1: memref<1xi32, #tpu.memory_space<smem>>) -> (i32, i32) {
    %c0_i32 = arith.constant 0 : i32
    %c0_i32_0 = arith.constant 0 : i32
    return %arg0, %c0_i32 : i32, i32
  }
  func.func @transform_1(%arg0: i32, %arg1: memref<1xi32, #tpu.memory_space<smem>>) -> (i32, i32) {
    %c0_i32 = arith.constant 0 : i32
    %c0_i32_0 = arith.constant 0 : i32
    %c0_i32_1 = arith.constant 0 : i32
    return %c0_i32, %c0_i32_0 : i32, i32
  }
  func.func @transform_2(%arg0: i32, %arg1: memref<1xi32, #tpu.memory_space<smem>>) -> (i32, i32) {
    %c0_i32 = arith.constant 0 : i32
    %c0_i32_0 = arith.constant 0 : i32
    %c0_i32_1 = arith.constant 0 : i32
    return %c0_i32, %c0_i32_0 : i32, i32
  }
  func.func @transform_3(%arg0: i32, %arg1: memref<1xi32, #tpu.memory_space<smem>>) -> (i32, i32) {
    %c0_i32 = arith.constant 0 : i32
    %c0_i32_0 = arith.constant 0 : i32
    %c0_i32_1 = arith.constant 0 : i32
    return %c0_i32, %c0_i32_0 : i32, i32
  }
  func.func @transform_4(%arg0: i32, %arg1: memref<1xi32, #tpu.memory_space<smem>>) -> (i32, i32) {
    %c0_i32 = arith.constant 0 : i32
    %c0_i32_0 = arith.constant 0 : i32
    %c0_i32_1 = arith.constant 0 : i32
    return %c0_i32, %c0_i32_0 : i32, i32
  }
  func.func @transform_5(%arg0: i32, %arg1: memref<1xi32, #tpu.memory_space<smem>>) -> (i32, i32) {
    %c0_i32 = arith.constant 0 : i32
    %c0_i32_0 = arith.constant 0 : i32
    %c0_i32_1 = arith.constant 0 : i32
    return %c0_i32, %c0_i32_0 : i32, i32
  }
  func.func @transform_6(%arg0: i32, %arg1: memref<1xi32, #tpu.memory_space<smem>>) -> (i32, i32) {
    %c0_i32 = arith.constant 0 : i32
    %c0_i32_0 = arith.constant 0 : i32
    %c0_i32_1 = arith.constant 0 : i32
    return %c0_i32, %c0_i32_0 : i32, i32
  }
  func.func @transform_7(%arg0: i32, %arg1: memref<1xi32, #tpu.memory_space<smem>>) -> (i32, i32) {
    %c0_i32 = arith.constant 0 : i32
    %c0_i32_0 = arith.constant 0 : i32
    return %c0_i32, %arg0 : i32, i32
  }
  func.func @transform_8(%arg0: i32, %arg1: memref<1xi32, #tpu.memory_space<smem>>) -> (i32, i32) {
    %c0_i32 = arith.constant 0 : i32
    %c0_i32_0 = arith.constant 0 : i32
    return %c0_i32, %arg0 : i32, i32
  }
}

</mosaic_0001>

<llo_original>
// kernel: tpu_custom_call.1
$region0: #{tpu_custom_call.1}
  #allocation0 [shape = 'u32[]', space=smem, size = 0x4, offset = 0x4, fixed_abs, tag = 'smem constant byte address 0x4 - core index']
  #allocation1 [shape = 'u32[144,128]{1,0:T(1,128)}', space=vmem, size = 0x12000, scoped, tag = 'internal scratch']
  #allocation2 [shape = 's32[1]{0}', space=sflag, size = 0x4, scoped, tag = 'scoped memory for tpu_custom_call.1']
  #allocation3 [shape = 's32[1]{0:T(128)S(6)}', space=smem, size = 0x200, scoped, tag = 'prefetched SMEM operand 0']
  %s0 = inlined_call_operand.<no memory space> [shape: s32[1], index: 0, kind: input, shape index: {}]
  %s1 = inlined_call_operand.vmem [shape: f32[256,32], index: 1, kind: input, shape index: {}]
  %s2 = inlined_call_operand.vmem [shape: f32[32,256], index: 2, kind: input, shape index: {}]
  %s3 = inlined_call_operand.vmem [shape: f32[1,256], index: 3, kind: input, shape index: {}]
  %s4 = inlined_call_operand.hbm [shape: f32[256,256], index: 4, kind: input, shape index: {}]
  %s5 = inlined_call_operand.vmem [shape: f32[1,256], index: 5, kind: input, shape index: {}]
  %s6 = inlined_call_operand.vmem [shape: f32[16,256], index: 6, kind: input, shape index: {}]
  %s7 = inlined_call_operand.vmem [shape: f32[16,1], index: 7, kind: input, shape index: {}]
  %s8 = inlined_call_operand.vmem [shape: f32[8,256], index: 8, kind: input, shape index: {}]
  %s9 = inlined_call_operand.hbm [shape: f32[16,256], index: 9, kind: output, shape index: {}]
  %s10 = sld [smem:[#allocation0]]
  $region46: #{tpu_custom_call.1} parent=0
    _
  %s12 = ssub.s32 1, %s10
  %s13 = scalar_select 0, %s12, %s10
  %14 = sst [smem:[#allocation3]] %s0
  $region1: #{tpu_custom_call.1} parent=0
    #allocation4 [shape = 'u8[262144]{0}', space=vmem, size = 0x40000, scoped, tag = 'input window, operand 4, single buffered']
    #allocation5 [shape = 's32[1]{0}', space=sflag, size = 0x4, scoped, tag = 'scoped memory for tpu_custom_call.1']
    #allocation6 [shape = 's32[1]{0}', space=sflag, size = 0x4, scoped, tag = 'scoped memory for tpu_custom_call.1']
    #allocation7 [shape = 'u8[16384]{0}', space=vmem, size = 0x4000, scoped, tag = 'output window, operand 0, single buffered']
    %15 = vsyncpa [#allocation5], 0
    %16 = vsyncpa [#allocation6], 0
    // Predicated region
    $region2: #{tpu_custom_call.1} parent=1 // pred_check
      _
    $region3: #{tpu_custom_call.1} parent=1 // pred_check_branch
      %18 = sbr.rel (0) target = $region5
    $region4: #{tpu_custom_call.1} parent=1 // pred_region
      _
    $region5: #{tpu_custom_call.1} parent=1 // pred_fallthru
      _
    // Predicated region
    $region6: #{tpu_custom_call.1} parent=1 // pred_check
      _
    $region7: #{tpu_custom_call.1} parent=1 // pred_check_branch
      %20 = sbr.rel (0) target = $region9
    $region8: #{tpu_custom_call.1} parent=1 // pred_region
      _
    $region9: #{tpu_custom_call.1} parent=1 // pred_fallthru
      _
    // Predicated region
    $region10: #{tpu_custom_call.1} parent=1 // pred_check
      _
    $region11: #{tpu_custom_call.1} parent=1 // pred_check_branch
      %22 = sbr.rel (0) target = $region13
    $region12: #{tpu_custom_call.1} parent=1 // pred_region
      _
    $region13: #{tpu_custom_call.1} parent=1 // pred_fallthru
      _
    // Predicated region
    $region14: #{tpu_custom_call.1} parent=1 // pred_check
      _
    $region15: #{tpu_custom_call.1} parent=1 // pred_check_branch
      %24 = sbr.rel (0) target = $region17
    $region16: #{tpu_custom_call.1} parent=1 // pred_region
      %s26 = ssub.s32 8192, 8192
      %27 = vsyncadd [#allocation5], %s26
      %s28 = sshll.u32 [#allocation4], 4
      %s29 = int_to_ptr.vmem [resolvable:$true] %s28
      %34 = dma.hbm_to_vmem [thread:$0]  %s4, 8192, %s29, [#allocation5], 256, 256, 16
    $region17: #{tpu_custom_call.1} parent=1 // pred_fallthru
      _
    // Predicated region
    $region18: #{tpu_custom_call.1} parent=1 // pred_check
      _
    $region19: #{tpu_custom_call.1} parent=1 // pred_check_branch
      %36 = sbr.rel (0) target = $region21
    $region20: #{tpu_custom_call.1} parent=1 // pred_region
      _
    $region21: #{tpu_custom_call.1} parent=1 // pred_fallthru
      _
    // Predicated region
    $region22: #{tpu_custom_call.1} parent=1 // pred_check
      _
    $region23: #{tpu_custom_call.1} parent=1 // pred_check_branch
      %38 = sbr.rel (0) target = $region25
    $region24: #{tpu_custom_call.1} parent=1 // pred_region
      _
    $region25: #{tpu_custom_call.1} parent=1 // pred_fallthru
      _
    // Predicated region
    $region26: #{tpu_custom_call.1} parent=1 // pred_check
      _
    $region27: #{tpu_custom_call.1} parent=1 // pred_check_branch
      %40 = sbr.rel (0) target = $region29
    $region28: #{tpu_custom_call.1} parent=1 // pred_region
      _
    $region29: #{tpu_custom_call.1} parent=1 // pred_fallthru
      _
    // Predicated region
    $region30: #{tpu_custom_call.1} parent=1 // pred_check
      _
    $region31: #{tpu_custom_call.1} parent=1 // pred_check_branch
      %42 = sbr.rel (0) target = $region33
    $region32: #{tpu_custom_call.1} parent=1 // pred_region
      _
    $region33: #{tpu_custom_call.1} parent=1 // pred_fallthru
      _
    // Predicated region
    $region34: #{tpu_custom_call.1} parent=1 // pred_check
      _
    $region35: #{tpu_custom_call.1} parent=1 // pred_check_branch
      %44 = sbr.rel (0) target = $region37
    $region36: #{tpu_custom_call.1} parent=1 // pred_region
      %45 = dma.done [#allocation5], 8192
    $region37: #{tpu_custom_call.1} parent=1 // pred_fallthru
      _
    %v46 = vld [vmem:[%s1] sm:$0xff]
    %v47 = vld [vmem:[%s1 + $0x8] sm:$0xff]
    %v48 = vld [vmem:[%s1 + $0x10] sm:$0xff]
    %v49 = vld [vmem:[%s1 + $0x18] sm:$0xff]
    %v50 = vld [vmem:[%s1 + $0x20] sm:$0xff]
    %v51 = vld [vmem:[%s1 + $0x28] sm:$0xff]
    %v52 = vld [vmem:[%s1 + $0x30] sm:$0xff]
    %v53 = vld [vmem:[%s1 + $0x38] sm:$0xff]
    %v54 = vld [vmem:[%s1 + $0x40] sm:$0xff]
    %v55 = vld [vmem:[%s1 + $0x48] sm:$0xff]
    %v56 = vld [vmem:[%s1 + $0x50] sm:$0xff]
    %v57 = vld [vmem:[%s1 + $0x58] sm:$0xff]
    %v58 = vld [vmem:[%s1 + $0x60] sm:$0xff]
    %v59 = vld [vmem:[%s1 + $0x68] sm:$0xff]
    %v60 = vld [vmem:[%s1 + $0x70] sm:$0xff]
    %v61 = vld [vmem:[%s1 + $0x78] sm:$0xff]
    %v62 = vld [vmem:[%s1 + $0x80] sm:$0xff]
    %v63 = vld [vmem:[%s1 + $0x88] sm:$0xff]
    %v64 = vld [vmem:[%s1 + $0x90] sm:$0xff]
    %v65 = vld [vmem:[%s1 + $0x98] sm:$0xff]
    %v66 = vld [vmem:[%s1 + $0xa0] sm:$0xff]
    %v67 = vld [vmem:[%s1 + $0xa8] sm:$0xff]
    %v68 = vld [vmem:[%s1 + $0xb0] sm:$0xff]
    %v69 = vld [vmem:[%s1 + $0xb8] sm:$0xff]
    %v70 = vld [vmem:[%s1 + $0xc0] sm:$0xff]
    %v71 = vld [vmem:[%s1 + $0xc8] sm:$0xff]
    %v72 = vld [vmem:[%s1 + $0xd0] sm:$0xff]
    %v73 = vld [vmem:[%s1 + $0xd8] sm:$0xff]
    %v74 = vld [vmem:[%s1 + $0xe0] sm:$0xff]
    %v75 = vld [vmem:[%s1 + $0xe8] sm:$0xff]
    %v76 = vld [vmem:[%s1 + $0xf0] sm:$0xff]
    %v77 = vld [vmem:[%s1 + $0xf8] sm:$0xff]
    %v78 = vld [vmem:[%s2] sm:$0xff]
    %v79 = vld [vmem:[%s2 + $0x8] sm:$0xff]
    %v80 = vld [vmem:[%s2 + $0x10] sm:$0xff]
    %v81 = vld [vmem:[%s2 + $0x18] sm:$0xff]
    %v82 = vld [vmem:[%s2 + $0x20] sm:$0xff]
    %v83 = vld [vmem:[%s2 + $0x28] sm:$0xff]
    %v84 = vld [vmem:[%s2 + $0x30] sm:$0xff]
    %v85 = vld [vmem:[%s2 + $0x38] sm:$0xff]
    %v86 = vld [vmem:[%s3] sm:$0x3]
    %v88 = vlaneseq
    %v89 = vshrl.u32 %v88, 7
    %v90 = vsub.s32 0, %v89
    %v91 = vrot.slane %v86, %v90
    %v92 = vlaneseq
    %v93 = vshrl.u32 %v92, 7
    %v94 = vsub.s32 1, %v93
    %v95 = vrot.slane %v86, %v94
    %vm98 = vcmask 261120
    %v100 = vsel %vm98, %v46, 0
    %v103 = vsel %vm98, %v47, 0
    %v106 = vsel %vm98, %v48, 0
    %v109 = vsel %vm98, %v49, 0
    %v112 = vsel %vm98, %v50, 0
    %v115 = vsel %vm98, %v51, 0
    %v118 = vsel %vm98, %v52, 0
    %v121 = vsel %vm98, %v53, 0
    %v124 = vsel %vm98, %v54, 0
    %v127 = vsel %vm98, %v55, 0
    %v130 = vsel %vm98, %v56, 0
    %v133 = vsel %vm98, %v57, 0
    %v136 = vsel %vm98, %v58, 0
    %v139 = vsel %vm98, %v59, 0
    %v142 = vsel %vm98, %v60, 0
    %v145 = vsel %vm98, %v61, 0
    %v148 = vsel %vm98, %v62, 0
    %v151 = vsel %vm98, %v63, 0
    %v154 = vsel %vm98, %v64, 0
    %v157 = vsel %vm98, %v65, 0
    %v160 = vsel %vm98, %v66, 0
    %v163 = vsel %vm98, %v67, 0
    %v166 = vsel %vm98, %v68, 0
    %v169 = vsel %vm98, %v69, 0
    %v172 = vsel %vm98, %v70, 0
    %v175 = vsel %vm98, %v71, 0
    %v178 = vsel %vm98, %v72, 0
    %v181 = vsel %vm98, %v73, 0
    %v184 = vsel %vm98, %v74, 0
    %v187 = vsel %vm98, %v75, 0
    %v190 = vsel %vm98, %v76, 0
    %v193 = vsel %vm98, %v77, 0
    %195 = vmatprep.subr.mxu0 0.0
    %196 = vmatpush1.msra.mxu0 0.0
    %197 = vmatprep.subr.mxu0 0.0
    %198 = vmatpush1.msra.mxu0 0.0
    %199 = vmatprep.subr.mxu0 0.0
    %200 = vmatpush1.msra.mxu0 0.0
    %201 = vmatprep.subr.mxu0 0.0
    %202 = vmatpush1.msra.mxu0 0.0
    %203 = vmatprep.subr.mxu0 0.0
    %204 = vmatpush1.msra.mxu0 0.0
    %205 = vmatprep.subr.mxu0 0.0
    %206 = vmatpush1.msra.mxu0 0.0
    %207 = vmatprep.subr.mxu0 0.0
    %208 = vmatpush1.msra.mxu0 0.0
    %209 = vmatprep.subr.mxu0 0.0
    %210 = vmatpush1.msra.mxu0 0.0
    %211 = vmatprep.subr.mxu0 0.0
    %212 = vmatpush1.msra.mxu0 0.0
    %213 = vmatprep.subr.mxu0 0.0
    %214 = vmatpush1.msra.mxu0 0.0
    %215 = vmatprep.subr.mxu0 0.0
    %216 = vmatpush1.msra.mxu0 0.0
    %217 = vmatprep.subr.mxu0 0.0
    %218 = vmatpush1.msra.mxu0 0.0
    %219 = vmatprep.subr.mxu0 %v85
    %220 = vmatpush1.msra.mxu0 %v84
    %221 = vmatprep.subr.mxu0 %v83
    %222 = vmatpush1.msra.mxu0 %v82
    %223 = vmatprep.subr.mxu0 %v81
    %224 = vmatpush1.msra.mxu0 %v80
    %225 = vmatprep.subr.mxu0 %v79
    %226 = vmatpush1.msra.mxu0 %v78
    %227 = vmatprep.subr.mxu0 0.0
    %228 = vmatpush2.msra.mxu0 0.0
    %229 = vmatprep.subr.mxu0 0.0
    %230 = vmatpush2.msra.mxu0 0.0
    %231 = vmatprep.subr.mxu0 0.0
    %232 = vmatpush2.msra.mxu0 0.0
    %233 = vmatprep.subr.mxu0 0.0
    %234 = vmatpush2.msra.mxu0 0.0
    %235 = vmatprep.subr.mxu0 0.0
    %236 = vmatpush2.msra.mxu0 0.0
    %237 = vmatprep.subr.mxu0 0.0
    %238 = vmatpush2.msra.mxu0 0.0
    %239 = vmatprep.subr.mxu0 0.0
    %240 = vmatpush2.msra.mxu0 0.0
    %241 = vmatprep.subr.mxu0 0.0
    %242 = vmatpush2.msra.mxu0 0.0
    %243 = vmatprep.subr.mxu0 0.0
    %244 = vmatpush2.msra.mxu0 0.0
    %245 = vmatprep.subr.mxu0 0.0
    %246 = vmatpush2.msra.mxu0 0.0
    %247 = vmatprep.subr.mxu0 0.0
    %248 = vmatpush2.msra.mxu0 0.0
    %249 = vmatprep.subr.mxu0 0.0
    %250 = vmatpush2.msra.mxu0 0.0
    %251 = vmatprep.subr.mxu0 0.0
    %252 = vmatpush2.msra.mxu0 0.0
    %253 = vmatprep.subr.mxu0 0.0
    %254 = vmatpush2.msra.mxu0 0.0
    %255 = vmatprep.subr.mxu0 0.0
    %256 = vmatpush2.msra.mxu0 0.0
    %257 = vmatprep.subr.mxu0 0.0
    %258 = vmatpush2.msra.mxu0 0.0
    %259 = vmatprep.mubr.f32.mxu0 0.0
    %260 = vmatmul.mubr.f32.gmra.mxu0 %v100
    %v261 = vpop.f32.mrf.mxu0
    %v262 = vadd.f32 %v91, %v261
    %v263 = vpop.f32.mrf.mxu0
    %v264 = vadd.f32 %v95, %v263
    %265 = vmatprep.mubr.f32.mxu0 0.0
    %266 = vmatmul.mubr.f32.gmra.mxu0 %v103
    %v267 = vpop.f32.mrf.mxu0
    %v268 = vadd.f32 %v91, %v267
    %v269 = vpop.f32.mrf.mxu0
    %v270 = vadd.f32 %v95, %v269
    %271 = vmatprep.mubr.f32.mxu0 0.0
    %272 = vmatmul.mubr.f32.gmra.mxu0 %v106
    %v273 = vpop.f32.mrf.mxu0
    %v274 = vadd.f32 %v91, %v273
    %v275 = vpop.f32.mrf.mxu0
    %v276 = vadd.f32 %v95, %v275
    %277 = vmatprep.mubr.f32.mxu0 0.0
    %278 = vmatmul.mubr.f32.gmra.mxu0 %v109
    %v279 = vpop.f32.mrf.mxu0
    %v280 = vadd.f32 %v91, %v279
    %v281 = vpop.f32.mrf.mxu0
    %v282 = vadd.f32 %v95, %v281
    %283 = vmatprep.mubr.f32.mxu0 0.0
    %284 = vmatmul.mubr.f32.gmra.mxu0 %v112
    %v285 = vpop.f32.mrf.mxu0
    %v286 = vadd.f32 %v91, %v285
    %v287 = vpop.f32.mrf.mxu0
    %v288 = vadd.f32 %v95, %v287
    %289 = vmatprep.mubr.f32.mxu0 0.0
    %290 = vmatmul.mubr.f32.gmra.mxu0 %v115
    %v291 = vpop.f32.mrf.mxu0
    %v292 = vadd.f32 %v91, %v291
    %v293 = vpop.f32.mrf.mxu0
    %v294 = vadd.f32 %v95, %v293
    %295 = vmatprep.mubr.f32.mxu0 0.0
    %296 = vmatmul.mubr.f32.gmra.mxu0 %v118
    %v297 = vpop.f32.mrf.mxu0
    %v298 = vadd.f32 %v91, %v297
    %v299 = vpop.f32.mrf.mxu0
    %v300 = vadd.f32 %v95, %v299
    %301 = vmatprep.mubr.f32.mxu0 0.0
    %302 = vmatmul.mubr.f32.gmra.mxu0 %v121
    %v303 = vpop.f32.mrf.mxu0
    %v304 = vadd.f32 %v91, %v303
    %v305 = vpop.f32.mrf.mxu0
    %v306 = vadd.f32 %v95, %v305
    %307 = vmatprep.mubr.f32.mxu0 0.0
    %308 = vmatmul.mubr.f32.gmra.mxu0 %v124
    %v309 = vpop.f32.mrf.mxu0
    %v310 = vadd.f32 %v91, %v309
    %v311 = vpop.f32.mrf.mxu0
    %v312 = vadd.f32 %v95, %v311
    %313 = vmatprep.mubr.f32.mxu0 0.0
    %314 = vmatmul.mubr.f32.gmra.mxu0 %v127
    %v315 = vpop.f32.mrf.mxu0
    %v316 = vadd.f32 %v91, %v315
    %v317 = vpop.f32.mrf.mxu0
    %v318 = vadd.f32 %v95, %v317
    %319 = vmatprep.mubr.f32.mxu0 0.0
    %320 = vmatmul.mubr.f32.gmra.mxu0 %v130
    %v321 = vpop.f32.mrf.mxu0
    %v322 = vadd.f32 %v91, %v321
    %v323 = vpop.f32.mrf.mxu0
    %v324 = vadd.f32 %v95, %v323
    %325 = vmatprep.mubr.f32.mxu0 0.0
    %326 = vmatmul.mubr.f32.gmra.mxu0 %v133
    %v327 = vpop.f32.mrf.mxu0
    %v328 = vadd.f32 %v91, %v327
    %v329 = vpop.f32.mrf.mxu0
    %v330 = vadd.f32 %v95, %v329
    %331 = vmatprep.mubr.f32.mxu0 0.0
    %332 = vmatmul.mubr.f32.gmra.mxu0 %v136
    %v333 = vpop.f32.mrf.mxu0
    %v334 = vadd.f32 %v91, %v333
    %v335 = vpop.f32.mrf.mxu0
    %v336 = vadd.f32 %v95, %v335
    %337 = vmatprep.mubr.f32.mxu0 0.0
    %338 = vmatmul.mubr.f32.gmra.mxu0 %v139
    %v339 = vpop.f32.mrf.mxu0
    %v340 = vadd.f32 %v91, %v339
    %v341 = vpop.f32.mrf.mxu0
    %v342 = vadd.f32 %v95, %v341
    %343 = vmatprep.mubr.f32.mxu0 0.0
    %344 = vmatmul.mubr.f32.gmra.mxu0 %v142
    %v345 = vpop.f32.mrf.mxu0
    %v346 = vadd.f32 %v91, %v345
    %v347 = vpop.f32.mrf.mxu0
    %v348 = vadd.f32 %v95, %v347
    %349 = vmatprep.mubr.f32.mxu0 0.0
    %350 = vmatmul.mubr.f32.gmra.mxu0 %v145
    %v351 = vpop.f32.mrf.mxu0
    %v352 = vadd.f32 %v91, %v351
    %v353 = vpop.f32.mrf.mxu0
    %v354 = vadd.f32 %v95, %v353
    %355 = vmatprep.mubr.f32.mxu0 0.0
    %356 = vmatmul.mubr.f32.gmra.mxu0 %v148
    %v357 = vpop.f32.mrf.mxu0
    %v358 = vadd.f32 %v91, %v357
    %v359 = vpop.f32.mrf.mxu0
    %v360 = vadd.f32 %v95, %v359
    %361 = vmatprep.mubr.f32.mxu0 0.0
    %362 = vmatmul.mubr.f32.gmra.mxu0 %v151
    %v363 = vpop.f32.mrf.mxu0
    %v364 = vadd.f32 %v91, %v363
    %v365 = vpop.f32.mrf.mxu0
    %v366 = vadd.f32 %v95, %v365
    %367 = vmatprep.mubr.f32.mxu0 0.0
    %368 = vmatmul.mubr.f32.gmra.mxu0 %v154
    %v369 = vpop.f32.mrf.mxu0
    %v370 = vadd.f32 %v91, %v369
    %v371 = vpop.f32.mrf.mxu0
    %v372 = vadd.f32 %v95, %v371
    %373 = vmatprep.mubr.f32.mxu0 0.0
    %374 = vmatmul.mubr.f32.gmra.mxu0 %v157
    %v375 = vpop.f32.mrf.mxu0
    %v376 = vadd.f32 %v91, %v375
    %v377 = vpop.f32.mrf.mxu0
    %v378 = vadd.f32 %v95, %v377
    %379 = vmatprep.mubr.f32.mxu0 0.0
    %380 = vmatmul.mubr.f32.gmra.mxu0 %v160
    %v381 = vpop.f32.mrf.mxu0
    %v382 = vadd.f32 %v91, %v381
    %v383 = vpop.f32.mrf.mxu0
    %v384 = vadd.f32 %v95, %v383
    %385 = vmatprep.mubr.f32.mxu0 0.0
    %386 = vmatmul.mubr.f32.gmra.mxu0 %v163
    %v387 = vpop.f32.mrf.mxu0
    %v388 = vadd.f32 %v91, %v387
    %v389 = vpop.f32.mrf.mxu0
    %v390 = vadd.f32 %v95, %v389
    %391 = vmatprep.mubr.f32.mxu0 0.0
    %392 = vmatmul.mubr.f32.gmra.mxu0 %v166
    %v393 = vpop.f32.mrf.mxu0
    %v394 = vadd.f32 %v91, %v393
    %v395 = vpop.f32.mrf.mxu0
    %v396 = vadd.f32 %v95, %v395
    %397 = vmatprep.mubr.f32.mxu0 0.0
    %398 = vmatmul.mubr.f32.gmra.mxu0 %v169
    %v399 = vpop.f32.mrf.mxu0
    %v400 = vadd.f32 %v91, %v399
    %v401 = vpop.f32.mrf.mxu0
    %v402 = vadd.f32 %v95, %v401
    %403 = vmatprep.mubr.f32.mxu0 0.0
    %404 = vmatmul.mubr.f32.gmra.mxu0 %v172
    %v405 = vpop.f32.mrf.mxu0
    %v406 = vadd.f32 %v91, %v405
    %v407 = vpop.f32.mrf.mxu0
    %v408 = vadd.f32 %v95, %v407
    %409 = vmatprep.mubr.f32.mxu0 0.0
    %410 = vmatmul.mubr.f32.gmra.mxu0 %v175
    %v411 = vpop.f32.mrf.mxu0
    %v412 = vadd.f32 %v91, %v411
    %v413 = vpop.f32.mrf.mxu0
    %v414 = vadd.f32 %v95, %v413
    %415 = vmatprep.mubr.f32.mxu0 0.0
    %416 = vmatmul.mubr.f32.gmra.mxu0 %v178
    %v417 = vpop.f32.mrf.mxu0
    %v418 = vadd.f32 %v91, %v417
    %v419 = vpop.f32.mrf.mxu0
    %v420 = vadd.f32 %v95, %v419
    %421 = vmatprep.mubr.f32.mxu0 0.0
    %422 = vmatmul.mubr.f32.gmra.mxu0 %v181
    %v423 = vpop.f32.mrf.mxu0
    %v424 = vadd.f32 %v91, %v423
    %v425 = vpop.f32.mrf.mxu0
    %v426 = vadd.f32 %v95, %v425
    %427 = vmatprep.mubr.f32.mxu0 0.0
    %428 = vmatmul.mubr.f32.gmra.mxu0 %v184
    %v429 = vpop.f32.mrf.mxu0
    %v430 = vadd.f32 %v91, %v429
    %v431 = vpop.f32.mrf.mxu0
    %v432 = vadd.f32 %v95, %v431
    %433 = vmatprep.mubr.f32.mxu0 0.0
    %434 = vmatmul.mubr.f32.gmra.mxu0 %v187
    %v435 = vpop.f32.mrf.mxu0
    %v436 = vadd.f32 %v91, %v435
    %v437 = vpop.f32.mrf.mxu0
    %v438 = vadd.f32 %v95, %v437
    %439 = vmatprep.mubr.f32.mxu0 0.0
    %440 = vmatmul.mubr.f32.gmra.mxu0 %v190
    %v441 = vpop.f32.mrf.mxu0
    %v442 = vadd.f32 %v91, %v441
    %v443 = vpop.f32.mrf.mxu0
    %v444 = vadd.f32 %v95, %v443
    %445 = vmatprep.mubr.f32.mxu0 0.0
    %446 = vmatmul.mubr.f32.gmra.mxu0 %v193
    %v447 = vpop.f32.mrf.mxu0
    %v448 = vadd.f32 %v91, %v447
    %v449 = vpop.f32.mrf.mxu0
    %v450 = vadd.f32 %v95, %v449
    %451 = vdwg.mxu0
    %v452 = vmax.f32 %v262, 0.0
    %v453 = vmax.f32 %v264, 0.0
    %v454 = vmax.f32 %v268, 0.0
    %v455 = vmax.f32 %v270, 0.0
    %v456 = vmax.f32 %v274, 0.0
    %v457 = vmax.f32 %v276, 0.0
    %v458 = vmax.f32 %v280, 0.0
    %v459 = vmax.f32 %v282, 0.0
    %v460 = vmax.f32 %v286, 0.0
    %v461 = vmax.f32 %v288, 0.0
    %v462 = vmax.f32 %v292, 0.0
    %v463 = vmax.f32 %v294, 0.0
    %v464 = vmax.f32 %v298, 0.0
    %v465 = vmax.f32 %v300, 0.0
    %v466 = vmax.f32 %v304, 0.0
    %v467 = vmax.f32 %v306, 0.0
    %v468 = vmax.f32 %v310, 0.0
    %v469 = vmax.f32 %v312, 0.0
    %v470 = vmax.f32 %v316, 0.0
    %v471 = vmax.f32 %v318, 0.0
    %v472 = vmax.f32 %v322, 0.0
    %v473 = vmax.f32 %v324, 0.0
    %v474 = vmax.f32 %v328, 0.0
    %v475 = vmax.f32 %v330, 0.0
    %v476 = vmax.f32 %v334, 0.0
    %v477 = vmax.f32 %v336, 0.0
    %v478 = vmax.f32 %v340, 0.0
    %v479 = vmax.f32 %v342, 0.0
    %v480 = vmax.f32 %v346, 0.0
    %v481 = vmax.f32 %v348, 0.0
    %v482 = vmax.f32 %v352, 0.0
    %v483 = vmax.f32 %v354, 0.0
    %v484 = vmax.f32 %v358, 0.0
    %v485 = vmax.f32 %v360, 0.0
    %v486 = vmax.f32 %v364, 0.0
    %v487 = vmax.f32 %v366, 0.0
    %v488 = vmax.f32 %v370, 0.0
    %v489 = vmax.f32 %v372, 0.0
    %v490 = vmax.f32 %v376, 0.0
    %v491 = vmax.f32 %v378, 0.0
    %v492 = vmax.f32 %v382, 0.0
    %v493 = vmax.f32 %v384, 0.0
    %v494 = vmax.f32 %v388, 0.0
    %v495 = vmax.f32 %v390, 0.0
    %v496 = vmax.f32 %v394, 0.0
    %v497 = vmax.f32 %v396, 0.0
    %v498 = vmax.f32 %v400, 0.0
    %v499 = vmax.f32 %v402, 0.0
    %v500 = vmax.f32 %v406, 0.0
    %v501 = vmax.f32 %v408, 0.0
    %v502 = vmax.f32 %v412, 0.0
    %v503 = vmax.f32 %v414, 0.0
    %v504 = vmax.f32 %v418, 0.0
    %v505 = vmax.f32 %v420, 0.0
    %v506 = vmax.f32 %v424, 0.0
    %v507 = vmax.f32 %v426, 0.0
    %v508 = vmax.f32 %v430, 0.0
    %v509 = vmax.f32 %v432, 0.0
    %v510 = vmax.f32 %v436, 0.0
    %v511 = vmax.f32 %v438, 0.0
    %v512 = vmax.f32 %v442, 0.0
    %v513 = vmax.f32 %v444, 0.0
    %v514 = vmax.f32 %v448, 0.0
    %v515 = vmax.f32 %v450, 0.0
    %v516 = vld [vmem:[#allocation4] sm:$0xff]
    %v517 = vld [vmem:[#allocation4 + $0x8] sm:$0xff]
    %v518 = vld [vmem:[#allocation4 + $0x10] sm:$0xff]
    %v519 = vld [vmem:[#allocation4 + $0x18] sm:$0xff]
    %v520 = vld [vmem:[#allocation4 + $0x20] sm:$0xff]
    %v521 = vld [vmem:[#allocation4 + $0x28] sm:$0xff]
    %v522 = vld [vmem:[#allocation4 + $0x30] sm:$0xff]
    %v523 = vld [vmem:[#allocation4 + $0x38] sm:$0xff]
    %v524 = vld [vmem:[#allocation4 + $0x40] sm:$0xff]
    %v525 = vld [vmem:[#allocation4 + $0x48] sm:$0xff]
    %v526 = vld [vmem:[#allocation4 + $0x50] sm:$0xff]
    %v527 = vld [vmem:[#allocation4 + $0x58] sm:$0xff]
    %v528 = vld [vmem:[#allocation4 + $0x60] sm:$0xff]
    %v529 = vld [vmem:[#allocation4 + $0x68] sm:$0xff]
    %v530 = vld [vmem:[#allocation4 + $0x70] sm:$0xff]
    %v531 = vld [vmem:[#allocation4 + $0x78] sm:$0xff]
    %v532 = vld [vmem:[#allocation4 + $0x80] sm:$0xff]
    %v533 = vld [vmem:[#allocation4 + $0x88] sm:$0xff]
    %v534 = vld [vmem:[#allocation4 + $0x90] sm:$0xff]
    %v535 = vld [vmem:[#allocation4 + $0x98] sm:$0xff]
    %v536 = vld [vmem:[#allocation4 + $0xa0] sm:$0xff]
    %v537 = vld [vmem:[#allocation4 + $0xa8] sm:$0xff]
    %v538 = vld [vmem:[#allocation4 + $0xb0] sm:$0xff]
    %v539 = vld [vmem:[#allocation4 + $0xb8] sm:$0xff]
    %v540 = vld [vmem:[#allocation4 + $0xc0] sm:$0xff]
    %v541 = vld [vmem:[#allocation4 + $0xc8] sm:$0xff]
    %v542 = vld [vmem:[#allocation4 + $0xd0] sm:$0xff]
    %v543 = vld [vmem:[#allocation4 + $0xd8] sm:$0xff]
    %v544 = vld [vmem:[#allocation4 + $0xe0] sm:$0xff]
    %v545 = vld [vmem:[#allocation4 + $0xe8] sm:$0xff]
    %v546 = vld [vmem:[#allocation4 + $0xf0] sm:$0xff]
    %v547 = vld [vmem:[#allocation4 + $0xf8] sm:$0xff]
    %v548 = vld [vmem:[#allocation4 + $0x100] sm:$0xff]
    %v549 = vld [vmem:[#allocation4 + $0x108] sm:$0xff]
    %v550 = vld [vmem:[#allocation4 + $0x110] sm:$0xff]
    %v551 = vld [vmem:[#allocation4 + $0x118] sm:$0xff]
    %v552 = vld [vmem:[#allocation4 + $0x120] sm:$0xff]
    %v553 = vld [vmem:[#allocation4 + $0x128] sm:$0xff]
    %v554 = vld [vmem:[#allocation4 + $0x130] sm:$0xff]
    %v555 = vld [vmem:[#allocation4 + $0x138] sm:$0xff]
    %v556 = vld [vmem:[#allocation4 + $0x140] sm:$0xff]
    %v557 = vld [vmem:[#allocation4 + $0x148] sm:$0xff]
    %v558 = vld [vmem:[#allocation4 + $0x150] sm:$0xff]
    %v559 = vld [vmem:[#allocation4 + $0x158] sm:$0xff]
    %v560 = vld [vmem:[#allocation4 + $0x160] sm:$0xff]
    %v561 = vld [vmem:[#allocation4 + $0x168] sm:$0xff]
    %v562 = vld [vmem:[#allocation4 + $0x170] sm:$0xff]
    %v563 = vld [vmem:[#allocation4 + $0x178] sm:$0xff]
    %v564 = vld [vmem:[#allocation4 + $0x180] sm:$0xff]
    %v565 = vld [vmem:[#allocation4 + $0x188] sm:$0xff]
    %v566 = vld [vmem:[#allocation4 + $0x190] sm:$0xff]
    %v567 = vld [vmem:[#allocation4 + $0x198] sm:$0xff]
    %v568 = vld [vmem:[#allocation4 + $0x1a0] sm:$0xff]
    %v569 = vld [vmem:[#allocation4 + $0x1a8] sm:$0xff]
    %v570 = vld [vmem:[#allocation4 + $0x1b0] sm:$0xff]
    %v571 = vld [vmem:[#allocation4 + $0x1b8] sm:$0xff]
    %v572 = vld [vmem:[#allocation4 + $0x1c0] sm:$0xff]
    %v573 = vld [vmem:[#allocation4 + $0x1c8] sm:$0xff]
    %v574 = vld [vmem:[#allocation4 + $0x1d0] sm:$0xff]
    %v575 = vld [vmem:[#allocation4 + $0x1d8] sm:$0xff]
    %v576 = vld [vmem:[#allocation4 + $0x1e0] sm:$0xff]
    %v577 = vld [vmem:[#allocation4 + $0x1e8] sm:$0xff]
    %v578 = vld [vmem:[#allocation4 + $0x1f0] sm:$0xff]
    %v579 = vld [vmem:[#allocation4 + $0x1f8] sm:$0xff]
    %v580 = vld [vmem:[%s5] sm:$0x3]
    %v582 = vlaneseq
    %v583 = vshrl.u32 %v582, 7
    %v584 = vsub.s32 0, %v583
    %v585 = vrot.slane %v580, %v584
    %v586 = vlaneseq
    %v587 = vshrl.u32 %v586, 7
    %v588 = vsub.s32 1, %v587
    %v589 = vrot.slane %v580, %v588
    %592 = vmatprep.subr.mxu0 %v547
    %593 = vmatpush1.msra.mxu0 %v546
    %594 = vmatprep.subr.mxu0 %v545
    %595 = vmatpush1.msra.mxu0 %v544
    %596 = vmatprep.subr.mxu0 %v543
    %597 = vmatpush1.msra.mxu0 %v542
    %598 = vmatprep.subr.mxu0 %v541
    %599 = vmatpush1.msra.mxu0 %v540
    %600 = vmatprep.subr.mxu0 %v539
    %601 = vmatpush1.msra.mxu0 %v538
    %602 = vmatprep.subr.mxu0 %v537
    %603 = vmatpush1.msra.mxu0 %v536
    %604 = vmatprep.subr.mxu0 %v535
    %605 = vmatpush1.msra.mxu0 %v534
    %606 = vmatprep.subr.mxu0 %v533
    %607 = vmatpush1.msra.mxu0 %v532
    %608 = vmatprep.subr.mxu0 %v531
    %609 = vmatpush1.msra.mxu0 %v530
    %610 = vmatprep.subr.mxu0 %v529
    %611 = vmatpush1.msra.mxu0 %v528
    %612 = vmatprep.subr.mxu0 %v527
    %613 = vmatpush1.msra.mxu0 %v526
    %614 = vmatprep.subr.mxu0 %v525
    %615 = vmatpush1.msra.mxu0 %v524
    %616 = vmatprep.subr.mxu0 %v523
    %617 = vmatpush1.msra.mxu0 %v522
    %618 = vmatprep.subr.mxu0 %v521
    %619 = vmatpush1.msra.mxu0 %v520
    %620 = vmatprep.subr.mxu0 %v519
    %621 = vmatpush1.msra.mxu0 %v518
    %622 = vmatprep.subr.mxu0 %v517
    %623 = vmatpush1.msra.mxu0 %v516
    %624 = vmatprep.subr.mxu0 %v579
    %625 = vmatpush2.msra.mxu0 %v578
    %626 = vmatprep.subr.mxu0 %v577
    %627 = vmatpush2.msra.mxu0 %v576
    %628 = vmatprep.subr.mxu0 %v575
    %629 = vmatpush2.msra.mxu0 %v574
    %630 = vmatprep.subr.mxu0 %v573
    %631 = vmatpush2.msra.mxu0 %v572
    %632 = vmatprep.subr.mxu0 %v571
    %633 = vmatpush2.msra.mxu0 %v570
    %634 = vmatprep.subr.mxu0 %v569
    %635 = vmatpush2.msra.mxu0 %v568
    %636 = vmatprep.subr.mxu0 %v567
    %637 = vmatpush2.msra.mxu0 %v566
    %638 = vmatprep.subr.mxu0 %v565
    %639 = vmatpush2.msra.mxu0 %v564
    %640 = vmatprep.subr.mxu0 %v563
    %641 = vmatpush2.msra.mxu0 %v562
    %642 = vmatprep.subr.mxu0 %v561
    %643 = vmatpush2.msra.mxu0 %v560
    %644 = vmatprep.subr.mxu0 %v559
    %645 = vmatpush2.msra.mxu0 %v558
    %646 = vmatprep.subr.mxu0 %v557
    %647 = vmatpush2.msra.mxu0 %v556
    %648 = vmatprep.subr.mxu0 %v555
    %649 = vmatpush2.msra.mxu0 %v554
    %650 = vmatprep.subr.mxu0 %v553
    %651 = vmatpush2.msra.mxu0 %v552
    %652 = vmatprep.subr.mxu0 %v551
    %653 = vmatpush2.msra.mxu0 %v550
    %654 = vmatprep.subr.mxu0 %v549
    %655 = vmatpush2.msra.mxu0 %v548
    %656 = vmatprep.mubr.f32.mxu0 %v453
    %657 = vmatmul.mubr.f32.gmra.mxu0 %v452
    %v658 = vpop.f32.mrf.mxu0
    %v659 = vadd.f32 %v585, %v658
    %v660 = vpop.f32.mrf.mxu0
    %v661 = vadd.f32 %v589, %v660
    %662 = vmatprep.mubr.f32.mxu0 %v455
    %663 = vmatmul.mubr.f32.gmra.mxu0 %v454
    %v664 = vpop.f32.mrf.mxu0
    %v665 = vadd.f32 %v585, %v664
    %v666 = vpop.f32.mrf.mxu0
    %v667 = vadd.f32 %v589, %v666
    %668 = vmatprep.mubr.f32.mxu0 %v457
    %669 = vmatmul.mubr.f32.gmra.mxu0 %v456
    %v670 = vpop.f32.mrf.mxu0
    %v671 = vadd.f32 %v585, %v670
    %v672 = vpop.f32.mrf.mxu0
    %v673 = vadd.f32 %v589, %v672
    %674 = vmatprep.mubr.f32.mxu0 %v459
    %675 = vmatmul.mubr.f32.gmra.mxu0 %v458
    %v676 = vpop.f32.mrf.mxu0
    %v677 = vadd.f32 %v585, %v676
    %v678 = vpop.f32.mrf.mxu0
    %v679 = vadd.f32 %v589, %v678
    %680 = vmatprep.mubr.f32.mxu0 %v461
    %681 = vmatmul.mubr.f32.gmra.mxu0 %v460
    %v682 = vpop.f32.mrf.mxu0
    %v683 = vadd.f32 %v585, %v682
    %v684 = vpop.f32.mrf.mxu0
    %v685 = vadd.f32 %v589, %v684
    %686 = vmatprep.mubr.f32.mxu0 %v463
    %687 = vmatmul.mubr.f32.gmra.mxu0 %v462
    %v688 = vpop.f32.mrf.mxu0
    %v689 = vadd.f32 %v585, %v688
    %v690 = vpop.f32.mrf.mxu0
    %v691 = vadd.f32 %v589, %v690
    %692 = vmatprep.mubr.f32.mxu0 %v465
    %693 = vmatmul.mubr.f32.gmra.mxu0 %v464
    %v694 = vpop.f32.mrf.mxu0
    %v695 = vadd.f32 %v585, %v694
    %v696 = vpop.f32.mrf.mxu0
    %v697 = vadd.f32 %v589, %v696
    %698 = vmatprep.mubr.f32.mxu0 %v467
    %699 = vmatmul.mubr.f32.gmra.mxu0 %v466
    %v700 = vpop.f32.mrf.mxu0
    %v701 = vadd.f32 %v585, %v700
    %v702 = vpop.f32.mrf.mxu0
    %v703 = vadd.f32 %v589, %v702
    %704 = vmatprep.mubr.f32.mxu0 %v469
    %705 = vmatmul.mubr.f32.gmra.mxu0 %v468
    %v706 = vpop.f32.mrf.mxu0
    %v707 = vadd.f32 %v585, %v706
    %v708 = vpop.f32.mrf.mxu0
    %v709 = vadd.f32 %v589, %v708
    %710 = vmatprep.mubr.f32.mxu0 %v471
    %711 = vmatmul.mubr.f32.gmra.mxu0 %v470
    %v712 = vpop.f32.mrf.mxu0
    %v713 = vadd.f32 %v585, %v712
    %v714 = vpop.f32.mrf.mxu0
    %v715 = vadd.f32 %v589, %v714
    %716 = vmatprep.mubr.f32.mxu0 %v473
    %717 = vmatmul.mubr.f32.gmra.mxu0 %v472
    %v718 = vpop.f32.mrf.mxu0
    %v719 = vadd.f32 %v585, %v718
    %v720 = vpop.f32.mrf.mxu0
    %v721 = vadd.f32 %v589, %v720
    %722 = vmatprep.mubr.f32.mxu0 %v475
    %723 = vmatmul.mubr.f32.gmra.mxu0 %v474
    %v724 = vpop.f32.mrf.mxu0
    %v725 = vadd.f32 %v585, %v724
    %v726 = vpop.f32.mrf.mxu0
    %v727 = vadd.f32 %v589, %v726
    %728 = vmatprep.mubr.f32.mxu0 %v477
    %729 = vmatmul.mubr.f32.gmra.mxu0 %v476
    %v730 = vpop.f32.mrf.mxu0
    %v731 = vadd.f32 %v585, %v730
    %v732 = vpop.f32.mrf.mxu0
    %v733 = vadd.f32 %v589, %v732
    %734 = vmatprep.mubr.f32.mxu0 %v479
    %735 = vmatmul.mubr.f32.gmra.mxu0 %v478
    %v736 = vpop.f32.mrf.mxu0
    %v737 = vadd.f32 %v585, %v736
    %v738 = vpop.f32.mrf.mxu0
    %v739 = vadd.f32 %v589, %v738
    %740 = vmatprep.mubr.f32.mxu0 %v481
    %741 = vmatmul.mubr.f32.gmra.mxu0 %v480
    %v742 = vpop.f32.mrf.mxu0
    %v743 = vadd.f32 %v585, %v742
    %v744 = vpop.f32.mrf.mxu0
    %v745 = vadd.f32 %v589, %v744
    %746 = vmatprep.mubr.f32.mxu0 %v483
    %747 = vmatmul.mubr.f32.gmra.mxu0 %v482
    %v748 = vpop.f32.mrf.mxu0
    %v749 = vadd.f32 %v585, %v748
    %v750 = vpop.f32.mrf.mxu0
    %v751 = vadd.f32 %v589, %v750
    %752 = vmatprep.mubr.f32.mxu0 %v485
    %753 = vmatmul.mubr.f32.gmra.mxu0 %v484
    %v754 = vpop.f32.mrf.mxu0
    %v755 = vadd.f32 %v585, %v754
    %v756 = vpop.f32.mrf.mxu0
    %v757 = vadd.f32 %v589, %v756
    %758 = vmatprep.mubr.f32.mxu0 %v487
    %759 = vmatmul.mubr.f32.gmra.mxu0 %v486
    %v760 = vpop.f32.mrf.mxu0
    %v761 = vadd.f32 %v585, %v760
    %v762 = vpop.f32.mrf.mxu0
    %v763 = vadd.f32 %v589, %v762
    %764 = vmatprep.mubr.f32.mxu0 %v489
    %765 = vmatmul.mubr.f32.gmra.mxu0 %v488
    %v766 = vpop.f32.mrf.mxu0
    %v767 = vadd.f32 %v585, %v766
    %v768 = vpop.f32.mrf.mxu0
    %v769 = vadd.f32 %v589, %v768
    %770 = vmatprep.mubr.f32.mxu0 %v491
    %771 = vmatmul.mubr.f32.gmra.mxu0 %v490
    %v772 = vpop.f32.mrf.mxu0
    %v773 = vadd.f32 %v585, %v772
    %v774 = vpop.f32.mrf.mxu0
    %v775 = vadd.f32 %v589, %v774
    %776 = vmatprep.mubr.f32.mxu0 %v493
    %777 = vmatmul.mubr.f32.gmra.mxu0 %v492
    %v778 = vpop.f32.mrf.mxu0
    %v779 = vadd.f32 %v585, %v778
    %v780 = vpop.f32.mrf.mxu0
    %v781 = vadd.f32 %v589, %v780
    %782 = vmatprep.mubr.f32.mxu0 %v495
    %783 = vmatmul.mubr.f32.gmra.mxu0 %v494
    %v784 = vpop.f32.mrf.mxu0
    %v785 = vadd.f32 %v585, %v784
    %v786 = vpop.f32.mrf.mxu0
    %v787 = vadd.f32 %v589, %v786
    %788 = vmatprep.mubr.f32.mxu0 %v497
    %789 = vmatmul.mubr.f32.gmra.mxu0 %v496
    %v790 = vpop.f32.mrf.mxu0
    %v791 = vadd.f32 %v585, %v790
    %v792 = vpop.f32.mrf.mxu0
    %v793 = vadd.f32 %v589, %v792
    %794 = vmatprep.mubr.f32.mxu0 %v499
    %795 = vmatmul.mubr.f32.gmra.mxu0 %v498
    %v796 = vpop.f32.mrf.mxu0
    %v797 = vadd.f32 %v585, %v796
    %v798 = vpop.f32.mrf.mxu0
    %v799 = vadd.f32 %v589, %v798
    %800 = vmatprep.mubr.f32.mxu0 %v501
    %801 = vmatmul.mubr.f32.gmra.mxu0 %v500
    %v802 = vpop.f32.mrf.mxu0
    %v803 = vadd.f32 %v585, %v802
    %v804 = vpop.f32.mrf.mxu0
    %v805 = vadd.f32 %v589, %v804
    %806 = vmatprep.mubr.f32.mxu0 %v503
    %807 = vmatmul.mubr.f32.gmra.mxu0 %v502
    %v808 = vpop.f32.mrf.mxu0
    %v809 = vadd.f32 %v585, %v808
    %v810 = vpop.f32.mrf.mxu0
    %v811 = vadd.f32 %v589, %v810
    %812 = vmatprep.mubr.f32.mxu0 %v505
    %813 = vmatmul.mubr.f32.gmra.mxu0 %v504
    %v814 = vpop.f32.mrf.mxu0
    %v815 = vadd.f32 %v585, %v814
    %v816 = vpop.f32.mrf.mxu0
    %v817 = vadd.f32 %v589, %v816
    %818 = vmatprep.mubr.f32.mxu0 %v507
    %819 = vmatmul.mubr.f32.gmra.mxu0 %v506
    %v820 = vpop.f32.mrf.mxu0
    %v821 = vadd.f32 %v585, %v820
    %v822 = vpop.f32.mrf.mxu0
    %v823 = vadd.f32 %v589, %v822
    %824 = vmatprep.mubr.f32.mxu0 %v509
    %825 = vmatmul.mubr.f32.gmra.mxu0 %v508
    %v826 = vpop.f32.mrf.mxu0
    %v827 = vadd.f32 %v585, %v826
    %v828 = vpop.f32.mrf.mxu0
    %v829 = vadd.f32 %v589, %v828
    %830 = vmatprep.mubr.f32.mxu0 %v511
    %831 = vmatmul.mubr.f32.gmra.mxu0 %v510
    %v832 = vpop.f32.mrf.mxu0
    %v833 = vadd.f32 %v585, %v832
    %v834 = vpop.f32.mrf.mxu0
    %v835 = vadd.f32 %v589, %v834
    %836 = vmatprep.mubr.f32.mxu0 %v513
    %837 = vmatmul.mubr.f32.gmra.mxu0 %v512
    %v838 = vpop.f32.mrf.mxu0
    %v839 = vadd.f32 %v585, %v838
    %v840 = vpop.f32.mrf.mxu0
    %v841 = vadd.f32 %v589, %v840
    %842 = vmatprep.mubr.f32.mxu0 %v515
    %843 = vmatmul.mubr.f32.gmra.mxu0 %v514
    %v844 = vpop.f32.mrf.mxu0
    %v845 = vadd.f32 %v585, %v844
    %v846 = vpop.f32.mrf.mxu0
    %v847 = vadd.f32 %v589, %v846
    %848 = vdwg.mxu0
    %v849 = vmax.f32 %v659, 0.0
    %v850 = vmax.f32 %v661, 0.0
    %v851 = vmax.f32 %v665, 0.0
    %v852 = vmax.f32 %v667, 0.0
    %v853 = vmax.f32 %v671, 0.0
    %v854 = vmax.f32 %v673, 0.0
    %v855 = vmax.f32 %v677, 0.0
    %v856 = vmax.f32 %v679, 0.0
    %v857 = vmax.f32 %v683, 0.0
    %v858 = vmax.f32 %v685, 0.0
    %v859 = vmax.f32 %v689, 0.0
    %v860 = vmax.f32 %v691, 0.0
    %v861 = vmax.f32 %v695, 0.0
    %v862 = vmax.f32 %v697, 0.0
    %v863 = vmax.f32 %v701, 0.0
    %v864 = vmax.f32 %v703, 0.0
    %v865 = vmax.f32 %v707, 0.0
    %v866 = vmax.f32 %v709, 0.0
    %v867 = vmax.f32 %v713, 0.0
    %v868 = vmax.f32 %v715, 0.0
    %v869 = vmax.f32 %v719, 0.0
    %v870 = vmax.f32 %v721, 0.0
    %v871 = vmax.f32 %v725, 0.0
    %v872 = vmax.f32 %v727, 0.0
    %v873 = vmax.f32 %v731, 0.0
    %v874 = vmax.f32 %v733, 0.0
    %v875 = vmax.f32 %v737, 0.0
    %v876 = vmax.f32 %v739, 0.0
    %v877 = vmax.f32 %v743, 0.0
    %v878 = vmax.f32 %v745, 0.0
    %v879 = vmax.f32 %v749, 0.0
    %v880 = vmax.f32 %v751, 0.0
    %v881 = vmax.f32 %v755, 0.0
    %v882 = vmax.f32 %v757, 0.0
    %v883 = vmax.f32 %v761, 0.0
    %v884 = vmax.f32 %v763, 0.0
    %v885 = vmax.f32 %v767, 0.0
    %v886 = vmax.f32 %v769, 0.0
    %v887 = vmax.f32 %v773, 0.0
    %v888 = vmax.f32 %v775, 0.0
    %v889 = vmax.f32 %v779, 0.0
    %v890 = vmax.f32 %v781, 0.0
    %v891 = vmax.f32 %v785, 0.0
    %v892 = vmax.f32 %v787, 0.0
    %v893 = vmax.f32 %v791, 0.0
    %v894 = vmax.f32 %v793, 0.0
    %v895 = vmax.f32 %v797, 0.0
    %v896 = vmax.f32 %v799, 0.0
    %v897 = vmax.f32 %v803, 0.0
    %v898 = vmax.f32 %v805, 0.0
    %v899 = vmax.f32 %v809, 0.0
    %v900 = vmax.f32 %v811, 0.0
    %v901 = vmax.f32 %v815, 0.0
    %v902 = vmax.f32 %v817, 0.0
    %v903 = vmax.f32 %v821, 0.0
    %v904 = vmax.f32 %v823, 0.0
    %v905 = vmax.f32 %v827, 0.0
    %v906 = vmax.f32 %v829, 0.0
    %v907 = vmax.f32 %v833, 0.0
    %v908 = vmax.f32 %v835, 0.0
    %v909 = vmax.f32 %v839, 0.0
    %v910 = vmax.f32 %v841, 0.0
    %v911 = vmax.f32 %v845, 0.0
    %v912 = vmax.f32 %v847, 0.0
    %v913 = vld [vmem:[%s6] sm:$0xff]
    %v914 = vld [vmem:[%s6 + $0x8] sm:$0xff]
    %v915 = vld [vmem:[%s6 + $0x10] sm:$0xff]
    %v916 = vld [vmem:[%s6 + $0x18] sm:$0xff]
    %v917 = vld [vmem:[%s7] sm:$0xff]
    %v918 = vld [vmem:[%s7 + $0x8] sm:$0xff]
    %920 = vset.pattern.permute.xlu0 0
    %921 = vperm.xlu0 %920, %v917
    %v922 = vpop.permute.xlu0 %921
    %925 = vset.pattern.permute.xlu0 0
    %926 = vperm.xlu0 %925, %v918
    %v927 = vpop.permute.xlu0 %926
    %929 = vmatprep.subr.mxu0 %v880
    %930 = vmatpush1.xpose.msra.mxu0 %v879
    %931 = vmatprep.subr.mxu0 %v878
    %932 = vmatpush1.xpose.msra.mxu0 %v877
    %933 = vmatprep.subr.mxu0 %v876
    %934 = vmatpush1.xpose.msra.mxu0 %v875
    %935 = vmatprep.subr.mxu0 %v874
    %936 = vmatpush1.xpose.msra.mxu0 %v873
    %937 = vmatprep.subr.mxu0 %v872
    %938 = vmatpush1.xpose.msra.mxu0 %v871
    %939 = vmatprep.subr.mxu0 %v870
    %940 = vmatpush1.xpose.msra.mxu0 %v869
    %941 = vmatprep.subr.mxu0 %v868
    %942 = vmatpush1.xpose.msra.mxu0 %v867
    %943 = vmatprep.subr.mxu0 %v866
    %944 = vmatpush1.xpose.msra.mxu0 %v865
    %945 = vmatprep.subr.mxu0 %v864
    %946 = vmatpush1.xpose.msra.mxu0 %v863
    %947 = vmatprep.subr.mxu0 %v862
    %948 = vmatpush1.xpose.msra.mxu0 %v861
    %949 = vmatprep.subr.mxu0 %v860
    %950 = vmatpush1.xpose.msra.mxu0 %v859
    %951 = vmatprep.subr.mxu0 %v858
    %952 = vmatpush1.xpose.msra.mxu0 %v857
    %953 = vmatprep.subr.mxu0 %v856
    %954 = vmatpush1.xpose.msra.mxu0 %v855
    %955 = vmatprep.subr.mxu0 %v854
    %956 = vmatpush1.xpose.msra.mxu0 %v853
    %957 = vmatprep.subr.mxu0 %v852
    %958 = vmatpush1.xpose.msra.mxu0 %v851
    %959 = vmatprep.subr.mxu0 %v850
    %960 = vmatpush1.xpose.msra.mxu0 %v849
    %961 = vmatprep.subr.mxu0 %v912
    %962 = vmatpush2.xpose.msra.mxu0 %v911
    %963 = vmatprep.subr.mxu0 %v910
    %964 = vmatpush2.xpose.msra.mxu0 %v909
    %965 = vmatprep.subr.mxu0 %v908
    %966 = vmatpush2.xpose.msra.mxu0 %v907
    %967 = vmatprep.subr.mxu0 %v906
    %968 = vmatpush2.xpose.msra.mxu0 %v905
    %969 = vmatprep.subr.mxu0 %v904
    %970 = vmatpush2.xpose.msra.mxu0 %v903
    %971 = vmatprep.subr.mxu0 %v902
    %972 = vmatpush2.xpose.msra.mxu0 %v901
    %973 = vmatprep.subr.mxu0 %v900
    %974 = vmatpush2.xpose.msra.mxu0 %v899
    %975 = vmatprep.subr.mxu0 %v898
    %976 = vmatpush2.xpose.msra.mxu0 %v897
    %977 = vmatprep.subr.mxu0 %v896
    %978 = vmatpush2.xpose.msra.mxu0 %v895
    %979 = vmatprep.subr.mxu0 %v894
    %980 = vmatpush2.xpose.msra.mxu0 %v893
    %981 = vmatprep.subr.mxu0 %v892
    %982 = vmatpush2.xpose.msra.mxu0 %v891
    %983 = vmatprep.subr.mxu0 %v890
    %984 = vmatpush2.xpose.msra.mxu0 %v889
    %985 = vmatprep.subr.mxu0 %v888
    %986 = vmatpush2.xpose.msra.mxu0 %v887
    %987 = vmatprep.subr.mxu0 %v886
    %988 = vmatpush2.xpose.msra.mxu0 %v885
    %989 = vmatprep.subr.mxu0 %v884
    %990 = vmatpush2.xpose.msra.mxu0 %v883
    %991 = vmatprep.subr.mxu0 %v882
    %992 = vmatpush2.xpose.msra.mxu0 %v881
    %993 = vmatprep.mubr.f32.mxu0 %v914
    %994 = vmatmul.mubr.f32.gmra.mxu0 %v913
    %v995 = vpop.f32.mrf.mxu0
    %v996 = vadd.f32 %v922, %v995
    %v997 = vpop.f32.mrf.mxu0
    %v998 = vadd.f32 %v922, %v997
    %999 = vmatprep.mubr.f32.mxu0 %v916
    %1000 = vmatmul.mubr.f32.gmra.mxu0 %v915
    %v1001 = vpop.f32.mrf.mxu0
    %v1002 = vadd.f32 %v927, %v1001
    %v1003 = vpop.f32.mrf.mxu0
    %v1004 = vadd.f32 %v927, %v1003
    %1005 = vdwg.mxu0
    %v1006 = vmax.f32 %v1002, -20.0
    %v1007 = vmax.f32 %v1004, -20.0
    %v1008 = vmin.f32 %v1006, 2.0
    %v1009 = vmin.f32 %v1007, 2.0
    %s1010 = sld [smem:[#allocation3]]
    %s1011 = scvt.s32.f32 %s1010
    %v1012 = vld [vmem:[%s8] sm:$0xff]
    %v1013 = vld [vmem:[%s8 + $0x8] sm:$0xff]
    %v1014 = vmul.f32 %v1008, 1.442695
    %v1015 = vpow.pop %v1014
    %v1016 = vmul.f32 %v1009, 1.442695
    %v1017 = vpow.pop %v1016
    %v1018 = vstv %s1011
    %v1019 = vmul.f32 %v1015, %v1018
    %v1020 = vmul.f32 %v1017, %v1018
    %v1021 = vmul.f32 %v1019, %v1012
    %v1022 = vmul.f32 %v1020, %v1013
    %v1023 = vadd.f32 %v996, %v1021
    %v1024 = vadd.f32 %v998, %v1022
    %v1025 = vtanh.pop %v1023
    %v1026 = vtanh.pop %v1024
    %v1027 = vmul.f32 %v1012, -0.5
    %v1028 = vmul.f32 %v1013, -0.5
    %v1029 = vmul.f32 %v1027, %v1012
    %v1030 = vmul.f32 %v1028, %v1013
    %v1031 = vsub.f32 %v1029, %v1008
    %v1032 = vsub.f32 %v1030, %v1009
    %v1033 = vsub.f32 %v1031, 0.9189385
    %v1034 = vsub.f32 %v1032, 0.9189385
    %v1035 = vsub.f32 0.6931472, %v1023
    %v1036 = vsub.f32 0.6931472, %v1024
    %v1037 = vmul.f32 %v1023, -2.0
    %v1038 = vmul.f32 %v1024, -2.0
    %v1039 = vmax.f32 %v1037, 0.0
    %v1040 = vmax.f32 %v1038, 0.0
    %v1041 = vand.u32 2147483647, %v1037
    %v1042 = vand.u32 2147483647, %v1038
    %v1043 = vsub.f32 0.0, %v1041
    %v1044 = vsub.f32 0.0, %v1042
    %v1045 = vmul.f32 %v1043, 1.442695
    %v1046 = vpow.pop %v1045
    %v1047 = vmul.f32 %v1044, 1.442695
    %v1048 = vpow.pop %v1047
    %v1049 = vadd.f32 %v1046, 1.0
    %v1050 = vlog2.pop %v1049
    %v1051 = vmul.f32 %v1050, 0.6931472
    %v1052 = vmul.f32 -0.5, %v1046
    %v1053 = vadd.f32 %v1052, 1.0
    %v1054 = vmul.f32 %v1053, %v1046
    %v1055 = vand.u32 2147483647, %v1046
    %vm1056 = vcmp.lt.f32.partialorder %v1055, 0.0004427343
    %v1057 = vsel %vm1056, %v1054, %v1051
    %v1058 = vadd.f32 %v1048, 1.0
    %v1059 = vlog2.pop %v1058
    %v1060 = vmul.f32 %v1059, 0.6931472
    %v1061 = vmul.f32 -0.5, %v1048
    %v1062 = vadd.f32 %v1061, 1.0
    %v1063 = vmul.f32 %v1062, %v1048
    %v1064 = vand.u32 2147483647, %v1048
    %vm1065 = vcmp.lt.f32.partialorder %v1064, 0.0004427343
    %v1066 = vsel %vm1065, %v1063, %v1060
    %v1067 = vadd.f32 %v1039, %v1057
    %v1068 = vadd.f32 %v1040, %v1066
    %v1069 = vsub.f32 %v1035, %v1067
    %v1070 = vsub.f32 %v1036, %v1068
    %v1071 = vmul.f32 %v1069, 2.0
    %v1072 = vmul.f32 %v1070, 2.0
    %v1073 = vsub.f32 %v1033, %v1071
    %v1074 = vsub.f32 %v1034, %v1072
    %1075 = vst [vmem:[#allocation7] sm:$0xff] %v1025
    %1076 = vst [vmem:[#allocation7 + $0x8] sm:$0xff] %v1026
    %1077 = vst [vmem:[#allocation7 + $0x10] sm:$0xff] %v1073
    %1078 = vst [vmem:[#allocation7 + $0x18] sm:$0xff] %v1074
    // Predicated region
    $region38: #{tpu_custom_call.1} parent=1 // pred_check
      _
    $region39: #{tpu_custom_call.1} parent=1 // pred_check_branch
      %1080 = sbr.rel (0) target = $region41
    $region40: #{tpu_custom_call.1} parent=1 // pred_region
      %s1082 = ssub.s32 512, 512
      %1083 = vsyncadd [#allocation6], %s1082
      %s1084 = sshll.u32 [#allocation7], 4
      %s1085 = int_to_ptr.vmem [resolvable:$true] %s1084
      %1090 = dma.vmem_to_hbm [thread:$0]  %s1085, 512, %s9, [#allocation6], 256, 256, 16
    $region41: #{tpu_custom_call.1} parent=1 // pred_fallthru
      _
    // Predicated region
    $region42: #{tpu_custom_call.1} parent=1 // pred_check
      _
    $region43: #{tpu_custom_call.1} parent=1 // pred_check_branch
      %1092 = sbr.rel (0) target = $region45
    $region44: #{tpu_custom_call.1} parent=1 // pred_region
      %1093 = dma.done [#allocation6], 512
    $region45: #{tpu_custom_call.1} parent=1 // pred_fallthru
      _
    %1094 = vsyncpa [#allocation5], 1
    %1095 = vsyncpa [#allocation6], 1

</llo_original>
